<compile_context>
chip_gen: v6e
topology: v6e:2x2x1
jax: 0.10.0
libtpu: 0.0.40
codegen_flags: <defaults>
</compile_context>

<pallas_src>
import functools

import jax
import jax.numpy as jnp
import numpy as np
from jax.experimental import pallas as pl
from jax.experimental.pallas import tpu as pltpu

SHARPNESS = 40.0  # matches the hard-coded `occupancy_pre_union * 40` in forward


def _sweeper_union_kernel(w_ref, logit_ref, sel_ref, pu_ref, occ_ref, *, training):
    """One (batch-tile, N-tile) step.

    w_ref:     (TB, K, 1)   union_layer_weights for these batch rows
    logit_ref: (TB, K, TN)  pre-sigmoid occupancy logits from the sweeper net
    sel_ref:   (TB, K, TN)  occupancy_pre_selection   (sigmoid)
    pu_ref:    (TB, K, TN)  occupancy_pre_union       (weighted)
    occ_ref:   (TB, 1, TN)  union-reduced occupancies
    """
    logits = logit_ref[...].astype(jnp.float32)      # (TB, K, TN)
    w = w_ref[...].astype(jnp.float32)               # (TB, K, 1)

    sel = jax.nn.sigmoid(logits)                     # (TB, K, TN)  -> EUP
    pu = w * sel                                     # einsum('bc,bmc->bmc')

    sel_ref[...] = sel.astype(sel_ref.dtype)
    pu_ref[...] = pu.astype(pu_ref.dtype)

    if training:
        # torch.softmax(pre_union * 40, dim=primitives); no_grad only affects grads.
        z = pu * SHARPNESS
        z = z - jnp.max(z, axis=1, keepdims=True)    # keep max-sub: weights unbounded
        e = jnp.exp(z)
        sm = e / jnp.sum(e, axis=1, keepdims=True)
        occ = jnp.sum(sm * pu, axis=1, keepdims=True)    # (TB, 1, TN)
    else:
        occ = jnp.max(pu, axis=1, keepdims=True)         # (TB, 1, TN)
    occ_ref[...] = occ.astype(occ_ref.dtype)


def _pick_tile_n(N, requested):
    """Largest legal lane tile <= requested.  Full-extent block if N is awkward."""
    if N % 128 != 0 or N <= requested:
        return N
    t = (min(requested, N) // 128) * 128
    while t > 128 and N % t != 0:
        t -= 128
    return max(t, 128)


def _pick_tile_b(B, K):
    """Pack batch rows so tile_b * K fills (up to) the 8 f32 sublanes."""
    best = 1
    for d in range(1, B + 1):
        if B % d == 0 and d * K <= 8:
            best = d
    return best


def neural_sweeper_union(sweeper_logits, union_layer_weights, is_training, *,
                         tile_n=2048, out_dtype=jnp.float32, torch_layout=True):
    """Pallas implementation of NeuralSweeper.forward from the sweeper-net
    output onward.

    sweeper_logits:       (B, K, N) pre-sigmoid logits (stand-in for
                          neural_sweeper(data).reshape(B, K, N))
    union_layer_weights:  (B, K)
    torch_layout=True  -> returns pu/sel as (B, N, K) like the PyTorch module
                          (costs two extra HBM passes for the transposes).
    torch_layout=False -> returns pu/sel in the kernel-native (B, K, N) layout.

    Returns (occupancies, occupancy_pre_union, occupancy_pre_selection,
             union_layer_weights).
    """
    B, K, N = sweeper_logits.shape
    tn = _pick_tile_n(N, tile_n)
    tb = _pick_tile_b(B, K)
    # Keep >=2 grid points on a parallel axis when cheap (v7x has 2 TensorCores).
    if (B // tb) == 1 and (N // tn) == 1 and tn % 256 == 0:
        tn //= 2

    w3 = union_layer_weights.reshape(B, K, 1)        # kernel casts on load

    kernel = functools.partial(_sweeper_union_kernel, training=bool(is_training))

    sel_kn, pu_kn, occ = pl.pallas_call(
        kernel,
        out_shape=(
            jax.ShapeDtypeStruct((B, K, N), out_dtype),
            jax.ShapeDtypeStruct((B, K, N), out_dtype),
            jax.ShapeDtypeStruct((B, 1, N), out_dtype),
        ),
        grid=(B // tb, N // tn),
        in_specs=[
            pl.BlockSpec((tb, K, 1), lambda b, n: (b, 0, 0)),
            pl.BlockSpec((tb, K, tn), lambda b, n: (b, 0, n)),
        ],
        out_specs=(
            pl.BlockSpec((tb, K, tn), lambda b, n: (b, 0, n)),
            pl.BlockSpec((tb, K, tn), lambda b, n: (b, 0, n)),
            pl.BlockSpec((tb, 1, tn), lambda b, n: (b, 0, n)),
        ),
        compiler_params=pltpu.CompilerParams(
            dimension_semantics=("parallel", "parallel")),
    )(w3, sweeper_logits)

    occupancies = occ.reshape(B, N)                                 # bitcast-level
    if torch_layout:
        occupancy_pre_selection = jnp.transpose(sel_kn, (0, 2, 1))  # (B, N, K)
        occupancy_pre_union = jnp.transpose(pu_kn, (0, 2, 1))       # (B, N, K)
    else:
        occupancy_pre_selection = sel_kn                            # (B, K, N)
        occupancy_pre_union = pu_kn                                 # (B, K, N)
    return occupancies, occupancy_pre_union, occupancy_pre_selection, union_layer_weights


def _reference(sweeper_logits, union_layer_weights, is_training):
    """Pure-JAX reference mirroring the PyTorch forward (post sweeper-net)."""
    sel = jax.nn.sigmoid(sweeper_logits.astype(jnp.float32))   # (B, K, N)
    sel = jnp.transpose(sel, (0, 2, 1))                        # (B, N, K)
    pu = union_layer_weights[:, None, :] * sel                 # einsum('bc,bmc->bmc')
    if is_training:
        sm = jax.nn.softmax(pu * SHARPNESS, axis=-1)
        occ = jnp.sum(sm * pu, axis=-1)
    else:
        occ = jnp.max(pu, axis=-1)
    return occ, pu, sel


if __name__ == "__main__":
    key = jax.random.PRNGKey(0)
    P = 11  # primitive parameter dim (per the PyTorch forward signature)

    for (B, K, N) in [(2, 4, 2048), (2, 4, 200), (3, 4, 384)]:
        k1, k2, k3, k4, key = jax.random.split(key, 5)

        # Module-level inputs (shapes per the PyTorch forward signature).
        sample_point_coordinates = jax.random.normal(k1, (B, N, 3), jnp.float32)
        primitive_parameters = jax.random.normal(k2, (B, K, P), jnp.float32)
        union_layer_weights = jax.nn.sigmoid(jax.random.normal(k3, (B, K), jnp.float32))
        union_mask = jnp.ones((1, K), jnp.float32)  # nn.Parameter (unused in forward)

        # TODO(synk): utils.sample_scaling_superellipse_points and the external
        # `neural_sweeper` point-cloud network are not defined in the module; their
        # combined output (pre-sigmoid occupancy logits, shape (B, K, N)) is
        # replaced by a deterministic stand-in tensor here.
        sweeper_logits = jax.random.normal(k4, (B, K, N), jnp.float32)

        for is_training in (False, True):
            outs = neural_sweeper_union(sweeper_logits, union_layer_weights, is_training)
            outs = jax.block_until_ready(outs)
            occ, pu, sel, w_out = outs
            occ_r, pu_r, sel_r = _reference(sweeper_logits, union_layer_weights, is_training)
            np.testing.assert_allclose(np.asarray(occ), np.asarray(occ_r), rtol=1e-5, atol=1e-5)
            np.testing.assert_allclose(np.asarray(pu), np.asarray(pu_r), rtol=1e-5, atol=1e-5)
            np.testing.assert_allclose(np.asarray(sel), np.asarray(sel_r), rtol=1e-5, atol=1e-5)
            assert occ.shape == (B, N) and pu.shape == (B, N, K) and sel.shape == (B, N, K)

            # Fast path: no PyTorch-layout transposes (kernel-native (B, K, N)).
            occ2, pu2, sel2, _ = jax.block_until_ready(
                neural_sweeper_union(sweeper_logits, union_layer_weights, is_training,
                                     torch_layout=False))
            np.testing.assert_allclose(np.asarray(occ2), np.asarray(occ_r), rtol=1e-5, atol=1e-5)
            np.testing.assert_allclose(np.asarray(jnp.transpose(pu2, (0, 2, 1))),
                                       np.asarray(pu_r), rtol=1e-5, atol=1e-5)
            np.testing.assert_allclose(np.asarray(jnp.transpose(sel2, (0, 2, 1))),
                                       np.asarray(sel_r), rtol=1e-5, atol=1e-5)

    print("KERNEL_OK")
</pallas_src>

<mosaic_0001>
module attributes {stable_mosaic.version = 11 : i64} {
  func.func @_sweeper_union_kernel(%arg0: i32, %arg1: i32, %arg2: memref<2x4x1xf32, #tpu.memory_space<vmem>>, %arg3: memref<2x4x1024xf32, #tpu.memory_space<vmem>>, %arg4: memref<2x4x1024xf32, #tpu.memory_space<vmem>>, %arg5: memref<2x4x1024xf32, #tpu.memory_space<vmem>>, %arg6: memref<2x1x1024xf32, #tpu.memory_space<vmem>>) attributes {dimension_semantics = [#tpu.dimension_semantics<parallel>, #tpu.dimension_semantics<parallel>], iteration_bounds = array<i64: 1, 2>, scalar_prefetch = 0 : i64, scratch_operands = 0 : i64, tpu.core_type = #tpu.core_type<tc>, window_params = [{transform_indices = @transform_0, window_bounds = array<i64: 2, 4, 1>}, {transform_indices = @transform_1, window_bounds = array<i64: 2, 4, 1024>}, {transform_indices = @transform_2, window_bounds = array<i64: 2, 4, 1024>}, {transform_indices = @transform_3, window_bounds = array<i64: 2, 4, 1024>}, {transform_indices = @transform_4, window_bounds = array<i64: 2, 1, 1024>}]} {
    %c0 = arith.constant 0 : index
    %c0_0 = arith.constant 0 : index
    %c0_1 = arith.constant 0 : index
    %0 = vector.load %arg3[%c0, %c0_0, %c0_1] : memref<2x4x1024xf32, #tpu.memory_space<vmem>>, vector<2x4x1024xf32>
    %c0_2 = arith.constant 0 : index
    %c0_3 = arith.constant 0 : index
    %c0_4 = arith.constant 0 : index
    %1 = vector.load %arg2[%c0_2, %c0_3, %c0_4] : memref<2x4x1xf32, #tpu.memory_space<vmem>>, vector<2x4x1xf32>
    %2 = arith.negf %0 : vector<2x4x1024xf32>
    %3 = math.exp %2 : vector<2x4x1024xf32>
    %cst = arith.constant 1.000000e+00 : f32
    %4 = vector.broadcast %cst : f32 to vector<2x4x1024xf32>
    %5 = arith.addf %4, %3 : vector<2x4x1024xf32>
    %6 = arith.divf %4, %5 : vector<2x4x1024xf32>
    %7 = vector.broadcast %1 : vector<2x4x1xf32> to vector<2x4x1024xf32>
    %8 = arith.mulf %7, %6 : vector<2x4x1024xf32>
    %c0_5 = arith.constant 0 : index
    %c0_6 = arith.constant 0 : index
    %c0_7 = arith.constant 0 : index
    %9 = vector.load %arg4[%c0_5, %c0_6, %c0_7] : memref<2x4x1024xf32, #tpu.memory_space<vmem>>, vector<2x4x1024xf32>
    tpu.vector_store %arg4[%c0_5, %c0_6, %c0_7], %6 {strides = array<i32>} : memref<2x4x1024xf32, #tpu.memory_space<vmem>>, vector<2x4x1024xf32>,
    %c0_8 = arith.constant 0 : index
    %c0_9 = arith.constant 0 : index
    %c0_10 = arith.constant 0 : index
    %10 = vector.load %arg5[%c0_8, %c0_9, %c0_10] : memref<2x4x1024xf32, #tpu.memory_space<vmem>>, vector<2x4x1024xf32>
    tpu.vector_store %arg5[%c0_8, %c0_9, %c0_10], %8 {strides = array<i32>} : memref<2x4x1024xf32, #tpu.memory_space<vmem>>, vector<2x4x1024xf32>,
    %cst_11 = arith.constant dense<0xFF800000> : vector<2x1024xf32>
    %11 = vector.multi_reduction <maximumf>, %8, %cst_11 [1] : vector<2x4x1024xf32> to vector<2x1024xf32>
    %12 = vector.shape_cast %11 : vector<2x1024xf32> to vector<2x1x1024xf32>
    %c0_12 = arith.constant 0 : index
    %c0_13 = arith.constant 0 : index
    %c0_14 = arith.constant 0 : index
    %13 = vector.load %arg6[%c0_12, %c0_13, %c0_14] : memref<2x1x1024xf32, #tpu.memory_space<vmem>>, vector<2x1x1024xf32>
    tpu.vector_store %arg6[%c0_12, %c0_13, %c0_14], %12 {strides = array<i32>} : memref<2x1x1024xf32, #tpu.memory_space<vmem>>, vector<2x1x1024xf32>,
    return
  }
  func.func @transform_0(%arg0: i32, %arg1: i32) -> (i32, i32, i32) {
    %c0_i32 = arith.constant 0 : i32
    %c0_i32_0 = arith.constant 0 : i32
    %c0_i32_1 = arith.constant 0 : i32
    return %arg0, %c0_i32, %c0_i32_0 : i32, i32, i32
  }
  func.func @transform_1(%arg0: i32, %arg1: i32) -> (i32, i32, i32) {
    %c0_i32 = arith.constant 0 : i32
    %c0_i32_0 = arith.constant 0 : i32
    return %arg0, %c0_i32, %arg1 : i32, i32, i32
  }
  func.func @transform_2(%arg0: i32, %arg1: i32) -> (i32, i32, i32) {
    %c0_i32 = arith.constant 0 : i32
    %c0_i32_0 = arith.constant 0 : i32
    return %arg0, %c0_i32, %arg1 : i32, i32, i32
  }
  func.func @transform_3(%arg0: i32, %arg1: i32) -> (i32, i32, i32) {
    %c0_i32 = arith.constant 0 : i32
    %c0_i32_0 = arith.constant 0 : i32
    return %arg0, %c0_i32, %arg1 : i32, i32, i32
  }
  func.func @transform_4(%arg0: i32, %arg1: i32) -> (i32, i32, i32) {
    %c0_i32 = arith.constant 0 : i32
    %c0_i32_0 = arith.constant 0 : i32
    return %arg0, %c0_i32, %arg1 : i32, i32, i32
  }
}

</mosaic_0001>

<llo_original>
// kernel: tpu_custom_call.1
$region0: #{tpu_custom_call.1}
  #allocation0 [shape = 'u32[]', space=smem, size = 0x4, offset = 0x4, fixed_abs, tag = 'smem constant byte address 0x4 - core index']
  #allocation1 [shape = 'u32[144,128]{1,0:T(1,128)}', space=vmem, size = 0x12000, scoped, tag = 'internal scratch']
  %s0 = inlined_call_operand.vmem [shape: f32[2,4,1], index: 0, kind: input, shape index: {}]
  %s1 = inlined_call_operand.hbm [shape: f32[2,4,2048], index: 1, kind: input, shape index: {}]
  %s2 = inlined_call_operand.hbm [shape: f32[2,4,2048], index: 2, kind: output, shape index: {0}]
  %s3 = inlined_call_operand.hbm [shape: f32[2,4,2048], index: 3, kind: output, shape index: {1}]
  %s4 = inlined_call_operand.hbm [shape: f32[2,1,2048], index: 4, kind: output, shape index: {2}]
  %5 = xla_tuple %s2, %s3, %s4
  %s6 = sld [smem:[#allocation0]]
  $region61: #{tpu_custom_call.1} parent=0
    _
  %s8 = ssub.s32 1, %s6
  %s9 = scalar_select 0, %s8, %s6
  $region1: #{tpu_custom_call.1} parent=0
    #allocation2 [shape = 'u8[65536]{0}', space=vmem, size = 0x10000, scoped, tag = 'input window, operand 1']
    #allocation3 [shape = 's32[2]{0}', space=sflag, size = 0x8, scoped, tag = 'scoped memory for tpu_custom_call.1']
    #allocation4 [shape = 's32[2]{0}', space=sflag, size = 0x8, scoped, tag = 'scoped memory for tpu_custom_call.1']
    #allocation5 [shape = 'u8[65536]{0}', space=vmem, size = 0x10000, scoped, tag = 'output window, operand 0']
    #allocation6 [shape = 'u8[65536]{0}', space=vmem, size = 0x10000, scoped, tag = 'output window, operand 1']
    #allocation7 [shape = 's32[2]{0}', space=sflag, size = 0x8, scoped, tag = 'scoped memory for tpu_custom_call.1']
    #allocation8 [shape = 'u8[16384]{0}', space=vmem, size = 0x4000, scoped, tag = 'output window, operand 2']
    %10 = vsyncpa [#allocation3], 0
    %s11 = scalar_lea.sflag [#allocation3], 1
    %12 = vsyncpa %s11, 0
    %13 = vsyncpa [#allocation4], 0
    %s14 = scalar_lea.sflag [#allocation4], 1
    %15 = vsyncpa %s14, 0
    %16 = vsyncpa [#allocation7], 0
    %s17 = scalar_lea.sflag [#allocation7], 1
    %18 = vsyncpa %s17, 0
    loop: start=0, step=1, limit=4
    $region2: #{tpu_custom_call.1} parent=1 // loop_pre_header
      _
    $region3: #{tpu_custom_call.1} parent=1 // loop_header
      %s20 = sphi 0, %s24
      %p21 = scmp.ge.s32.totalorder %s20, 4
      %s27 = sphi 0, %s39
      %s28 = sphi 0, %s35
      %s29 = sphi 0, %s27
      %s30 = sphi 0, %s28
      %s31 = sphi 0, %s29
      %s32 = sphi 0, %s30
      %s42 = sphi 0, %s44
      %s45 = sphi 0, %s42
      %s46 = sphi 0, %s45
      %s62 = sphi 0, %s46
      %s70 = sphi 0, %s72
      %s73 = sphi 0, %s70
      %s74 = sphi 0, %s73
      %s90 = sphi 0, %s74
      %s98 = sphi 0, %s100
      %s101 = sphi 0, %s98
      %s102 = sphi 0, %s101
      %s118 = sphi 0, %s102
      %s126 = sphi 0, %s128
      %s129 = sphi 0, %s126
      %s130 = sphi 0, %s129
      %s146 = sphi 0, %s130
      %s154 = sphi 0, %s156
      %s157 = sphi 0, %s154
      %s158 = sphi 0, %s157
      %s174 = sphi 0, %s158
    $region4: #{tpu_custom_call.1} parent=1 // loop_header_branch
      %23 = sbr.rel (%p21) target = $region8
    $region5: #{tpu_custom_call.1} parent=1 // loop_body
      %s25 = ssub.s32 %s20, 1
      %s26 = ssub.s32 %s20, 2
      %s33 = sadd.s32 1, %s28
      %p34 = scmp.ge.s32.totalorder %s33, 2
      %s35 = scalar_select %p34, 0, %s33
      %s36 = sadd.s32 1, %s27
      %s37 = scalar_select %p34, %s36, %s27
      %p38 = scmp.ge.s32.totalorder %s37, 1
      %s39 = scalar_select %p38, 0, %s37
      %s40 = ssub.s32 %s27, %s39
      %p41 = scmp.eq.s32.totalorder %s40, 0
      %s43 = sadd.s32 %s42, 1
      %s44 = scalar_select %p41, %s42, %s43
      %p47 = pneg %p41
      %p48 = scmp.eq.s32.totalorder %s20, 1
      %p49 = por %p47, %p48
      %p50 = scmp.ne.s32.totalorder %s42, %s45
      %p51 = scmp.eq.s32.totalorder %s20, 0
      %p52 = por %p50, %p51
      %p53 = scmp.ne.s32.totalorder %s42, %s45
      %p54 = scmp.eq.s32.totalorder %s25, 1
      %p55 = por %p53, %p54
      %p56 = scmp.ne.s32.totalorder %s45, %s46
      %p57 = scmp.eq.s32.totalorder %s25, 0
      %p58 = por %p56, %p57
      %p59 = scmp.ne.s32.totalorder %s45, %s46
      %p60 = scmp.eq.s32.totalorder %s26, 1
      %p61 = por %p59, %p60
      %p63 = scmp.ne.s32.totalorder %s46, %s62
      %p64 = scmp.eq.s32.totalorder %s26, 0
      %p65 = por %p63, %p64
      %s66 = ssub.s32 %s27, %s39
      %s67 = ssub.s32 %s28, %s35
      %s68 = sor.u32 %s66, %s67
      %p69 = scmp.eq.s32.totalorder %s68, 0
      %s71 = sadd.s32 %s70, 1
      %s72 = scalar_select %p69, %s70, %s71
      %p75 = pneg %p69
      %p76 = scmp.eq.s32.totalorder %s20, 1
      %p77 = por %p75, %p76
      %p78 = scmp.ne.s32.totalorder %s70, %s73
      %p79 = scmp.eq.s32.totalorder %s20, 0
      %p80 = por %p78, %p79
      %p81 = scmp.ne.s32.totalorder %s70, %s73
      %p82 = scmp.eq.s32.totalorder %s25, 1
      %p83 = por %p81, %p82
      %p84 = scmp.ne.s32.totalorder %s73, %s74
      %p85 = scmp.eq.s32.totalorder %s25, 0
      %p86 = por %p84, %p85
      %p87 = scmp.ne.s32.totalorder %s73, %s74
      %p88 = scmp.eq.s32.totalorder %s26, 1
      %p89 = por %p87, %p88
      %p91 = scmp.ne.s32.totalorder %s74, %s90
      %p92 = scmp.eq.s32.totalorder %s26, 0
      %p93 = por %p91, %p92
      %s94 = ssub.s32 %s27, %s39
      %s95 = ssub.s32 %s28, %s35
      %s96 = sor.u32 %s94, %s95
      %p97 = scmp.eq.s32.totalorder %s96, 0
      %s99 = sadd.s32 %s98, 1
      %s100 = scalar_select %p97, %s98, %s99
      %p103 = pneg %p97
      %p104 = scmp.eq.s32.totalorder %s20, 1
      %p105 = por %p103, %p104
      %p106 = scmp.ne.s32.totalorder %s98, %s101
      %p107 = scmp.eq.s32.totalorder %s20, 0
      %p108 = por %p106, %p107
      %p109 = scmp.ne.s32.totalorder %s98, %s101
      %p110 = scmp.eq.s32.totalorder %s25, 1
      %p111 = por %p109, %p110
      %p112 = scmp.ne.s32.totalorder %s101, %s102
      %p113 = scmp.eq.s32.totalorder %s25, 0
      %p114 = por %p112, %p113
      %p115 = scmp.ne.s32.totalorder %s101, %s102
      %p116 = scmp.eq.s32.totalorder %s26, 1
      %p117 = por %p115, %p116
      %p119 = scmp.ne.s32.totalorder %s102, %s118
      %p120 = scmp.eq.s32.totalorder %s26, 0
      %p121 = por %p119, %p120
      %s122 = ssub.s32 %s27, %s39
      %s123 = ssub.s32 %s28, %s35
      %s124 = sor.u32 %s122, %s123
      %p125 = scmp.eq.s32.totalorder %s124, 0
      %s127 = sadd.s32 %s126, 1
      %s128 = scalar_select %p125, %s126, %s127
      %p131 = pneg %p125
      %p132 = scmp.eq.s32.totalorder %s20, 1
      %p133 = por %p131, %p132
      %p134 = scmp.ne.s32.totalorder %s126, %s129
      %p135 = scmp.eq.s32.totalorder %s20, 0
      %p136 = por %p134, %p135
      %p137 = scmp.ne.s32.totalorder %s126, %s129
      %p138 = scmp.eq.s32.totalorder %s25, 1
      %p139 = por %p137, %p138
      %p140 = scmp.ne.s32.totalorder %s129, %s130
      %p141 = scmp.eq.s32.totalorder %s25, 0
      %p142 = por %p140, %p141
      %p143 = scmp.ne.s32.totalorder %s129, %s130
      %p144 = scmp.eq.s32.totalorder %s26, 1
      %p145 = por %p143, %p144
      %p147 = scmp.ne.s32.totalorder %s130, %s146
      %p148 = scmp.eq.s32.totalorder %s26, 0
      %p149 = por %p147, %p148
      %s150 = ssub.s32 %s27, %s39
      %s151 = ssub.s32 %s28, %s35
      %s152 = sor.u32 %s150, %s151
      %p153 = scmp.eq.s32.totalorder %s152, 0
      %s155 = sadd.s32 %s154, 1
      %s156 = scalar_select %p153, %s154, %s155
      %p159 = pneg %p153
      %p160 = scmp.eq.s32.totalorder %s20, 1
      %p161 = por %p159, %p160
      %p162 = scmp.ne.s32.totalorder %s154, %s157
      %p163 = scmp.eq.s32.totalorder %s20, 0
      %p164 = por %p162, %p163
      %p165 = scmp.ne.s32.totalorder %s154, %s157
      %p166 = scmp.eq.s32.totalorder %s25, 1
      %p167 = por %p165, %p166
      %p168 = scmp.ne.s32.totalorder %s157, %s158
      %p169 = scmp.eq.s32.totalorder %s25, 0
      %p170 = por %p168, %p169
      %p171 = scmp.ne.s32.totalorder %s157, %s158
      %p172 = scmp.eq.s32.totalorder %s26, 1
      %p173 = por %p171, %p172
      %p175 = scmp.ne.s32.totalorder %s158, %s174
      %p176 = scmp.eq.s32.totalorder %s26, 0
      %p177 = por %p175, %p176
      %p178 = scmp.le.s32.totalorder 1, %s20
      %p179 = scmp.lt.s32.totalorder %s20, 3
      %p180 = pnand %p178, %p179
      %p181 = pneg %p180
      // Predicated region
      $region9: #{tpu_custom_call.1} parent=5 // pred_check
        _
      $region10: #{tpu_custom_call.1} parent=5 // pred_check_branch
        %183 = sbr.rel (%p180) target = $region12
      $region11: #{tpu_custom_call.1} parent=5 // pred_region
        %s184 = ssub.s32 %s20, 1
        // Predicated region
        $region13: #{tpu_custom_call.1} parent=11 // pred_check
          %p185 = pneg %p58
        $region14: #{tpu_custom_call.1} parent=11 // pred_check_branch
          %187 = sbr.rel (%p185) target = $region16
        $region15: #{tpu_custom_call.1} parent=11 // pred_region
          %s188 = smul.u32 2, %s29
          %p189 = scmp.lt.s32.totalorder %s188, 1
          %s190 = scalar_select %p189, %s188, 1
          %s191 = smul.addr %s190, 4
          %s192 = scalar_lea.vmem %s0, %s191
          %s193 = smul.u32 2, %s29
        $region16: #{tpu_custom_call.1} parent=11 // pred_fallthru
          _
      $region12: #{tpu_custom_call.1} parent=5 // pred_fallthru
        _
      %p194 = scmp.lt.s32.totalorder %s20, 2
      // Predicated region
      $region17: #{tpu_custom_call.1} parent=5 // pred_check
        %p195 = pneg %p194
      $region18: #{tpu_custom_call.1} parent=5 // pred_check_branch
        %197 = sbr.rel (%p195) target = $region20
      $region19: #{tpu_custom_call.1} parent=5 // pred_region
        // Predicated region
        $region21: #{tpu_custom_call.1} parent=19 // pred_check
          %p198 = pneg %p80
        $region22: #{tpu_custom_call.1} parent=19 // pred_check_branch
          %200 = sbr.rel (%p198) target = $region24
        $region23: #{tpu_custom_call.1} parent=19 // pred_region
          %s201 = sand.u32 %s70, 1
          %s202 = scalar_lea.sflag [#allocation3], %s201
          %s203 = sand.u32 %s70, 1
          %s204 = smul.addr %s203, 64
          %s205 = scalar_lea.vmem [#allocation2], %s204
          %s206 = smul.u32 2, %s27
          %s207 = smul.u32 8, %s28
          %s209 = ssub.s32 1024, 1024
          %210 = vsyncadd %s202, %s209
          %s211 = smul.addr %s206, 16
          %s212 = sadd.s32 %s207, %s211
          %s213 = smul.addr %s212, 64
          %s214 = scalar_lea.hbm %s1, %s213
          %s215 = sshll.u32 %s205, 4
          %s216 = int_to_ptr.vmem [resolvable:$true] %s215
          %221 = dma.hbm_to_vmem [thread:$0]  %s214, 1024, %s216, %s202, 1024, 512, 32
        $region24: #{tpu_custom_call.1} parent=19 // pred_fallthru
          _
      $region20: #{tpu_custom_call.1} parent=5 // pred_fallthru
        _
      %p222 = scmp.le.s32.totalorder 1, %s20
      %p223 = scmp.lt.s32.totalorder %s20, 3
      %p224 = pnand %p222, %p223
      %p225 = pneg %p224
      // Predicated region
      $region25: #{tpu_custom_call.1} parent=5 // pred_check
        _
      $region26: #{tpu_custom_call.1} parent=5 // pred_check_branch
        %227 = sbr.rel (%p224) target = $region28
      $region27: #{tpu_custom_call.1} parent=5 // pred_region
        %s228 = ssub.s32 %s20, 1
        %s229 = sand.u32 %s73, 1
        %s230 = scalar_lea.sflag [#allocation3], %s229
        %s231 = sand.u32 %s73, 1
        %s232 = smul.addr %s231, 64
        %s233 = scalar_lea.vmem [#allocation2], %s232
        // Predicated region
        $region29: #{tpu_custom_call.1} parent=27 // pred_check
          %p234 = pneg %p86
        $region30: #{tpu_custom_call.1} parent=27 // pred_check_branch
          %236 = sbr.rel (%p234) target = $region32
        $region31: #{tpu_custom_call.1} parent=27 // pred_region
          %237 = dma.done %s230, 1024
        $region32: #{tpu_custom_call.1} parent=27 // pred_fallthru
          _
        %s238 = smul.u32 2, %s29
        %p239 = scmp.lt.s32.totalorder %s238, 1
        %s240 = scalar_select %p239, %s238, 1
        %s241 = smul.addr %s240, 4
        %s242 = scalar_lea.vmem %s0, %s241
        %p243 = pneg %p58
        %p244 = pneg %p55
        %s245 = sand.u32 %s73, 1
        %s246 = scalar_lea.sflag [#allocation3], %s245
        %s247 = sand.u32 %s73, 1
        %s248 = smul.addr %s247, 64
        %s249 = scalar_lea.vmem [#allocation2], %s248
        %p250 = pneg %p86
        %p251 = pneg %p83
        %p252 = pneg %p114
        %p253 = pneg %p111
        %s254 = sand.u32 %s101, 1
        %s255 = scalar_lea.sflag [#allocation4], %s254
        %s256 = sand.u32 %s101, 1
        %s257 = smul.addr %s256, 64
        %s258 = scalar_lea.vmem [#allocation5], %s257
        %p259 = pneg %p142
        %p260 = pneg %p139
        %s261 = sand.u32 %s25, 1
        %s262 = scalar_lea.sflag [#allocation7], %s261
        %s263 = sand.u32 %s129, 1
        %s264 = smul.addr %s263, 64
        %s265 = scalar_lea.vmem [#allocation6], %s264
        %p266 = pneg %p170
        %p267 = pneg %p167
        %s268 = sand.u32 %s25, 1
        %s269 = scalar_lea.sflag [#allocation7], %s268
        %s270 = sand.u32 %s157, 1
        %s271 = smul.addr %s270, 16
        %s272 = scalar_lea.vmem [#allocation8], %s271
        %s273 = smul.u32 2, %s29
        %p274 = scmp.lt.s32.totalorder %s273, 1
        %s275 = scalar_select %p274, %s273, 1
        %s276 = smul.addr %s275, 4
        %s277 = scalar_lea.vmem %s0, %s276
        %s278 = smul.u32 2, %s29
        %s279 = smul.u32 2, %s29
        %s280 = smul.u32 8, %s30
        %s281 = smul.u32 2, %s29
        %s282 = smul.u32 8, %s30
        %s283 = smul.u32 2, %s29
        %s284 = smul.u32 8, %s30
        %s285 = smul.u32 2, %s29
        %s286 = smul.u32 8, %s30
        %v287 = vld [vmem:[%s233] sm:$0xff]
        %v288 = vld [vmem:[%s233 + $0x8] sm:$0xff]
        %v289 = vld [vmem:[%s233 + $0x10] sm:$0xff]
        %v290 = vld [vmem:[%s233 + $0x18] sm:$0xff]
        %v291 = vld [vmem:[%s233 + $0x20] sm:$0xff]
        %v292 = vld [vmem:[%s233 + $0x28] sm:$0xff]
        %v293 = vld [vmem:[%s233 + $0x30] sm:$0xff]
        %v294 = vld [vmem:[%s233 + $0x38] sm:$0xff]
        %v295 = vld [vmem:[%s277] sm:$0xf]
        %v296 = vld [vmem:[%s277 + $0x4] sm:$0xf]
        %v297 = vxor.u32 %v287, 2147483648
        %v298 = vxor.u32 %v288, 2147483648
        %v299 = vxor.u32 %v289, 2147483648
        %v300 = vxor.u32 %v290, 2147483648
        %v301 = vxor.u32 %v291, 2147483648
        %v302 = vxor.u32 %v292, 2147483648
        %v303 = vxor.u32 %v293, 2147483648
        %v304 = vxor.u32 %v294, 2147483648
        %v305 = vmul.f32 %v297, 1.442695
        %v306 = vpow.pop %v305
        %v307 = vmul.f32 %v298, 1.442695
        %v308 = vpow.pop %v307
        %v309 = vmul.f32 %v299, 1.442695
        %v310 = vpow.pop %v309
        %v311 = vmul.f32 %v300, 1.442695
        %v312 = vpow.pop %v311
        %v313 = vmul.f32 %v301, 1.442695
        %v314 = vpow.pop %v313
        %v315 = vmul.f32 %v302, 1.442695
        %v316 = vpow.pop %v315
        %v317 = vmul.f32 %v303, 1.442695
        %v318 = vpow.pop %v317
        %v319 = vmul.f32 %v304, 1.442695
        %v320 = vpow.pop %v319
        %v321 = vadd.f32 %v306, 1.0
        %v322 = vadd.f32 %v308, 1.0
        %v323 = vadd.f32 %v310, 1.0
        %v324 = vadd.f32 %v312, 1.0
        %v325 = vadd.f32 %v314, 1.0
        %v326 = vadd.f32 %v316, 1.0
        %v327 = vadd.f32 %v318, 1.0
        %v328 = vadd.f32 %v320, 1.0
        %v329 = vrcp.pop %v321
        %v330 = vmul.f32 1.0, %v329
        %v331 = vrcp.pop %v322
        %v332 = vmul.f32 1.0, %v331
        %v333 = vrcp.pop %v323
        %v334 = vmul.f32 1.0, %v333
        %v335 = vrcp.pop %v324
        %v336 = vmul.f32 1.0, %v335
        %v337 = vrcp.pop %v325
        %v338 = vmul.f32 1.0, %v337
        %v339 = vrcp.pop %v326
        %v340 = vmul.f32 1.0, %v339
        %v341 = vrcp.pop %v327
        %v342 = vmul.f32 1.0, %v341
        %v343 = vrcp.pop %v328
        %v344 = vmul.f32 1.0, %v343
        %346 = vset.pattern.permute.xlu0 0
        %347 = vperm.xlu0 %346, %v295
        %v348 = vpop.permute.xlu0 %347
        %351 = vset.pattern.permute.xlu0 0
        %352 = vperm.xlu0 %351, %v296
        %v353 = vpop.permute.xlu0 %352
        %v363 = vcombine.high %v330, %v330
        %v364 = vcombine.high %v332, %v332
        %v365 = vcombine.high %v334, %v334
        %v366 = vcombine.high %v336, %v336
        %v367 = vcombine.high %v338, %v338
        %v368 = vcombine.high %v340, %v340
        %v369 = vcombine.high %v342, %v342
        %v370 = vcombine.high %v344, %v344
        %v379 = vmul.f32 %v348, %v330
        %v380 = vmul.f32 %v348, %v363
        %v381 = vmul.f32 %v348, %v332
        %v382 = vmul.f32 %v348, %v364
        %v383 = vmul.f32 %v348, %v334
        %v384 = vmul.f32 %v348, %v365
        %v385 = vmul.f32 %v348, %v336
        %v386 = vmul.f32 %v348, %v366
        %v387 = vmul.f32 %v353, %v338
        %v388 = vmul.f32 %v353, %v367
        %v389 = vmul.f32 %v353, %v340
        %v390 = vmul.f32 %v353, %v368
        %v391 = vmul.f32 %v353, %v342
        %v392 = vmul.f32 %v353, %v369
        %v393 = vmul.f32 %v353, %v344
        %v394 = vmul.f32 %v353, %v370
        %395 = vst [vmem:[%s258] sm:$0xff] %v330
        %396 = vst [vmem:[%s258 + $0x8] sm:$0xff] %v332
        %397 = vst [vmem:[%s258 + $0x10] sm:$0xff] %v334
        %398 = vst [vmem:[%s258 + $0x18] sm:$0xff] %v336
        %399 = vst [vmem:[%s258 + $0x20] sm:$0xff] %v338
        %400 = vst [vmem:[%s258 + $0x28] sm:$0xff] %v340
        %401 = vst [vmem:[%s258 + $0x30] sm:$0xff] %v342
        %402 = vst [vmem:[%s258 + $0x38] sm:$0xff] %v344
        %v419 = vcombine.low %v379, %v380
        %v420 = vcombine.low %v381, %v382
        %v421 = vcombine.low %v383, %v384
        %v422 = vcombine.low %v385, %v386
        %v423 = vcombine.low %v387, %v388
        %v424 = vcombine.low %v389, %v390
        %v425 = vcombine.low %v391, %v392
        %v426 = vcombine.low %v393, %v394
        %435 = vst [vmem:[%s265] sm:$0xff] %v419
        %436 = vst [vmem:[%s265 + $0x8] sm:$0xff] %v420
        %437 = vst [vmem:[%s265 + $0x10] sm:$0xff] %v421
        %438 = vst [vmem:[%s265 + $0x18] sm:$0xff] %v422
        %439 = vst [vmem:[%s265 + $0x20] sm:$0xff] %v423
        %440 = vst [vmem:[%s265 + $0x28] sm:$0xff] %v424
        %441 = vst [vmem:[%s265 + $0x30] sm:$0xff] %v425
        %442 = vst [vmem:[%s265 + $0x38] sm:$0xff] %v426
        %vm443 = vcmask 1043456
        %v444 = vsel %vm443, %v379, -inf
        %v445 = vrot.slane %v444, 4
        %v446 = vmax.f32 %v444, %v445
        %v447 = vrot.slane %v446, 2
        %v448 = vmax.f32 %v446, %v447
        %v449 = vrot.slane %v448, 1
        %v450 = vmax.f32 %v448, %v449
        %v451 = vsel %vm443, %v380, -inf
        %v452 = vrot.slane %v451, 4
        %v453 = vmax.f32 %v451, %v452
        %v454 = vrot.slane %v453, 2
        %v455 = vmax.f32 %v453, %v454
        %v456 = vrot.slane %v455, 1
        %v457 = vmax.f32 %v455, %v456
        %v458 = vsel %vm443, %v381, -inf
        %v459 = vrot.slane %v458, 4
        %v460 = vmax.f32 %v458, %v459
        %v461 = vrot.slane %v460, 2
        %v462 = vmax.f32 %v460, %v461
        %v463 = vrot.slane %v462, 1
        %v464 = vmax.f32 %v462, %v463
        %v465 = vsel %vm443, %v382, -inf
        %v466 = vrot.slane %v465, 4
        %v467 = vmax.f32 %v465, %v466
        %v468 = vrot.slane %v467, 2
        %v469 = vmax.f32 %v467, %v468
        %v470 = vrot.slane %v469, 1
        %v471 = vmax.f32 %v469, %v470
        %v472 = vsel %vm443, %v383, -inf
        %v473 = vrot.slane %v472, 4
        %v474 = vmax.f32 %v472, %v473
        %v475 = vrot.slane %v474, 2
        %v476 = vmax.f32 %v474, %v475
        %v477 = vrot.slane %v476, 1
        %v478 = vmax.f32 %v476, %v477
        %v479 = vsel %vm443, %v384, -inf
        %v480 = vrot.slane %v479, 4
        %v481 = vmax.f32 %v479, %v480
        %v482 = vrot.slane %v481, 2
        %v483 = vmax.f32 %v481, %v482
        %v484 = vrot.slane %v483, 1
        %v485 = vmax.f32 %v483, %v484
        %v486 = vsel %vm443, %v385, -inf
        %v487 = vrot.slane %v486, 4
        %v488 = vmax.f32 %v486, %v487
        %v489 = vrot.slane %v488, 2
        %v490 = vmax.f32 %v488, %v489
        %v491 = vrot.slane %v490, 1
        %v492 = vmax.f32 %v490, %v491
        %v493 = vsel %vm443, %v386, -inf
        %v494 = vrot.slane %v493, 4
        %v495 = vmax.f32 %v493, %v494
        %v496 = vrot.slane %v495, 2
        %v497 = vmax.f32 %v495, %v496
        %v498 = vrot.slane %v497, 1
        %v499 = vmax.f32 %v497, %v498
        %v500 = vsel %vm443, %v387, -inf
        %v501 = vrot.slane %v500, 4
        %v502 = vmax.f32 %v500, %v501
        %v503 = vrot.slane %v502, 2
        %v504 = vmax.f32 %v502, %v503
        %v505 = vrot.slane %v504, 1
        %v506 = vmax.f32 %v504, %v505
        %v507 = vsel %vm443, %v388, -inf
        %v508 = vrot.slane %v507, 4
        %v509 = vmax.f32 %v507, %v508
        %v510 = vrot.slane %v509, 2
        %v511 = vmax.f32 %v509, %v510
        %v512 = vrot.slane %v511, 1
        %v513 = vmax.f32 %v511, %v512
        %v514 = vsel %vm443, %v389, -inf
        %v515 = vrot.slane %v514, 4
        %v516 = vmax.f32 %v514, %v515
        %v517 = vrot.slane %v516, 2
        %v518 = vmax.f32 %v516, %v517
        %v519 = vrot.slane %v518, 1
        %v520 = vmax.f32 %v518, %v519
        %v521 = vsel %vm443, %v390, -inf
        %v522 = vrot.slane %v521, 4
        %v523 = vmax.f32 %v521, %v522
        %v524 = vrot.slane %v523, 2
        %v525 = vmax.f32 %v523, %v524
        %v526 = vrot.slane %v525, 1
        %v527 = vmax.f32 %v525, %v526
        %v528 = vsel %vm443, %v391, -inf
        %v529 = vrot.slane %v528, 4
        %v530 = vmax.f32 %v528, %v529
        %v531 = vrot.slane %v530, 2
        %v532 = vmax.f32 %v530, %v531
        %v533 = vrot.slane %v532, 1
        %v534 = vmax.f32 %v532, %v533
        %v535 = vsel %vm443, %v392, -inf
        %v536 = vrot.slane %v535, 4
        %v537 = vmax.f32 %v535, %v536
        %v538 = vrot.slane %v537, 2
        %v539 = vmax.f32 %v537, %v538
        %v540 = vrot.slane %v539, 1
        %v541 = vmax.f32 %v539, %v540
        %v542 = vsel %vm443, %v393, -inf
        %v543 = vrot.slane %v542, 4
        %v544 = vmax.f32 %v542, %v543
        %v545 = vrot.slane %v544, 2
        %v546 = vmax.f32 %v544, %v545
        %v547 = vrot.slane %v546, 1
        %v548 = vmax.f32 %v546, %v547
        %v549 = vsel %vm443, %v394, -inf
        %v550 = vrot.slane %v549, 4
        %v551 = vmax.f32 %v549, %v550
        %v552 = vrot.slane %v551, 2
        %v553 = vmax.f32 %v551, %v552
        %v554 = vrot.slane %v553, 1
        %v555 = vmax.f32 %v553, %v554
        %v572 = vcombine.low %v450, %v457
        %v573 = vcombine.low %v464, %v471
        %v574 = vcombine.low %v478, %v485
        %v575 = vcombine.low %v492, %v499
        %v577 = vunpack.c.l.s4 1966171168
        %v578 = vunpack.c.0.s8 %v577
        %v579 = vlaneseq
        %v580 = vshrl.u32 %v579, 7
        %v581 = vsub.s32 %v578, %v580
        %v582 = vrot.slane %v572, %v581
        %v584 = vunpack.c.l.s4 1966171168
        %v585 = vunpack.c.0.s8 %v584
        %v586 = vlaneseq
        %v587 = vshrl.u32 %v586, 7
        %v588 = vsub.s32 %v585, %v587
        %v589 = vrot.slane %v573, %v588
        %v591 = vunpack.c.l.s4 1966171168
        %v592 = vunpack.c.0.s8 %v591
        %v593 = vlaneseq
        %v594 = vshrl.u32 %v593, 7
        %v595 = vsub.s32 %v592, %v594
        %v596 = vrot.slane %v574, %v595
        %v598 = vunpack.c.l.s4 1966171168
        %v599 = vunpack.c.0.s8 %v598
        %v600 = vlaneseq
        %v601 = vshrl.u32 %v600, 7
        %v602 = vsub.s32 %v599, %v601
        %v603 = vrot.slane %v575, %v602
        %v604 = vcombine.low %v582, %v589
        %v605 = vcombine.low %v596, %v603
        %v607 = vunpack.c.l.s4 1966171168
        %v608 = vunpack.c.0.s8 %v607
        %v609 = vlaneseq
        %v610 = vshrl.u32 %v609, 7
        %v611 = vsub.s32 %v608, %v610
        %v612 = vrot.slane %v604, %v611
        %v614 = vunpack.c.l.s4 1966171168
        %v615 = vunpack.c.0.s8 %v614
        %v616 = vlaneseq
        %v617 = vshrl.u32 %v616, 7
        %v618 = vsub.s32 %v615, %v617
        %v619 = vrot.slane %v605, %v618
        %v620 = vcombine.low %v612, %v619
        %v621 = vcombine.low %v506, %v513
        %v622 = vcombine.low %v520, %v527
        %v623 = vcombine.low %v534, %v541
        %v624 = vcombine.low %v548, %v555
        %v626 = vunpack.c.l.s4 1966171168
        %v627 = vunpack.c.0.s8 %v626
        %v628 = vlaneseq
        %v629 = vshrl.u32 %v628, 7
        %v630 = vsub.s32 %v627, %v629
        %v631 = vrot.slane %v621, %v630
        %v633 = vunpack.c.l.s4 1966171168
        %v634 = vunpack.c.0.s8 %v633
        %v635 = vlaneseq
        %v636 = vshrl.u32 %v635, 7
        %v637 = vsub.s32 %v634, %v636
        %v638 = vrot.slane %v622, %v637
        %v640 = vunpack.c.l.s4 1966171168
        %v641 = vunpack.c.0.s8 %v640
        %v642 = vlaneseq
        %v643 = vshrl.u32 %v642, 7
        %v644 = vsub.s32 %v641, %v643
        %v645 = vrot.slane %v623, %v644
        %v647 = vunpack.c.l.s4 1966171168
        %v648 = vunpack.c.0.s8 %v647
        %v649 = vlaneseq
        %v650 = vshrl.u32 %v649, 7
        %v651 = vsub.s32 %v648, %v650
        %v652 = vrot.slane %v624, %v651
        %v653 = vcombine.low %v631, %v638
        %v654 = vcombine.low %v645, %v652
        %v656 = vunpack.c.l.s4 1966171168
        %v657 = vunpack.c.0.s8 %v656
        %v658 = vlaneseq
        %v659 = vshrl.u32 %v658, 7
        %v660 = vsub.s32 %v657, %v659
        %v661 = vrot.slane %v653, %v660
        %v663 = vunpack.c.l.s4 1966171168
        %v664 = vunpack.c.0.s8 %v663
        %v665 = vlaneseq
        %v666 = vshrl.u32 %v665, 7
        %v667 = vsub.s32 %v664, %v666
        %v668 = vrot.slane %v654, %v667
        %v669 = vcombine.low %v661, %v668
        %672 = vst [vmem:[%s272] sm:$0xff] %v620
        %673 = vst [vmem:[%s272 + $0x8] sm:$0xff] %v669
        %s674 = sand.u32 %s101, 1
        %s675 = scalar_lea.sflag [#allocation4], %s674
        %s676 = sand.u32 %s101, 1
        %s677 = smul.addr %s676, 64
        %s678 = scalar_lea.vmem [#allocation5], %s677
        %s679 = sand.u32 %s25, 1
        %s680 = scalar_lea.sflag [#allocation7], %s679
        %s681 = sand.u32 %s129, 1
        %s682 = smul.addr %s681, 64
        %s683 = scalar_lea.vmem [#allocation6], %s682
        %s684 = sand.u32 %s25, 1
        %s685 = scalar_lea.sflag [#allocation7], %s684
        %s686 = sand.u32 %s157, 1
        %s687 = smul.addr %s686, 16
        %s688 = scalar_lea.vmem [#allocation8], %s687
        // Predicated region
        $region33: #{tpu_custom_call.1} parent=27 // pred_check
          %p689 = pneg %p111
        $region34: #{tpu_custom_call.1} parent=27 // pred_check_branch
          %691 = sbr.rel (%p689) target = $region36
        $region35: #{tpu_custom_call.1} parent=27 // pred_region
          %s692 = smul.u32 2, %s29
          %s693 = smul.u32 8, %s30
          %s695 = ssub.s32 1024, 1024
          %696 = vsyncadd %s675, %s695
          %s697 = smul.addr %s692, 16
          %s698 = sadd.s32 %s693, %s697
          %s699 = smul.addr %s698, 64
          %s700 = scalar_lea.hbm %s2, %s699
          %s701 = sshll.u32 %s678, 4
          %s702 = int_to_ptr.vmem [resolvable:$true] %s701
          %707 = dma.vmem_to_hbm [thread:$0]  %s702, 1024, %s700, %s675, 512, 1024, 32
        $region36: #{tpu_custom_call.1} parent=27 // pred_fallthru
          _
        // Predicated region
        $region37: #{tpu_custom_call.1} parent=27 // pred_check
          %p708 = pneg %p139
        $region38: #{tpu_custom_call.1} parent=27 // pred_check_branch
          %710 = sbr.rel (%p708) target = $region40
        $region39: #{tpu_custom_call.1} parent=27 // pred_region
          %s711 = smul.u32 2, %s29
          %s712 = smul.u32 8, %s30
          %s714 = ssub.s32 1024, 1024
          %715 = vsyncadd %s680, %s714
          %s716 = smul.addr %s711, 16
          %s717 = sadd.s32 %s712, %s716
          %s718 = smul.addr %s717, 64
          %s719 = scalar_lea.hbm %s3, %s718
          %s720 = sshll.u32 %s683, 4
          %s721 = int_to_ptr.vmem [resolvable:$true] %s720
          %726 = dma.vmem_to_hbm [thread:$0]  %s721, 1024, %s719, %s680, 512, 1024, 32
        $region40: #{tpu_custom_call.1} parent=27 // pred_fallthru
          _
        // Predicated region
        $region41: #{tpu_custom_call.1} parent=27 // pred_check
          %p727 = pneg %p167
        $region42: #{tpu_custom_call.1} parent=27 // pred_check_branch
          %729 = sbr.rel (%p727) target = $region44
        $region43: #{tpu_custom_call.1} parent=27 // pred_region
          %s730 = smul.u32 2, %s29
          %s731 = smul.u32 8, %s30
          %s733 = ssub.s32 256, 256
          %734 = vsyncadd %s685, %s733
          %s735 = smul.addr %s730, 16
          %s736 = sadd.s32 %s731, %s735
          %s737 = smul.addr %s736, 16
          %s738 = scalar_lea.hbm %s4, %s737
          %s739 = sshll.u32 %s688, 4
          %s740 = int_to_ptr.vmem [resolvable:$true] %s739
          %745 = dma.vmem_to_hbm [thread:$0]  %s740, 256, %s738, %s685, 128, 256, 8
        $region44: #{tpu_custom_call.1} parent=27 // pred_fallthru
          _
      $region28: #{tpu_custom_call.1} parent=5 // pred_fallthru
        _
      %p746 = scmp.le.s32.totalorder 2, %s20
      // Predicated region
      $region45: #{tpu_custom_call.1} parent=5 // pred_check
        %p747 = pneg %p746
      $region46: #{tpu_custom_call.1} parent=5 // pred_check_branch
        %749 = sbr.rel (%p747) target = $region48
      $region47: #{tpu_custom_call.1} parent=5 // pred_region
        %s750 = ssub.s32 %s20, 2
        // Predicated region
        $region49: #{tpu_custom_call.1} parent=47 // pred_check
          %p751 = pneg %p117
        $region50: #{tpu_custom_call.1} parent=47 // pred_check_branch
          %753 = sbr.rel (%p751) target = $region52
        $region51: #{tpu_custom_call.1} parent=47 // pred_region
          %s754 = sand.u32 %s102, 1
          %s755 = scalar_lea.sflag [#allocation4], %s754
          %s756 = sand.u32 %s102, 1
          %s757 = smul.addr %s756, 64
          %s758 = scalar_lea.vmem [#allocation5], %s757
          %759 = dma.done %s755, 1024
        $region52: #{tpu_custom_call.1} parent=47 // pred_fallthru
          _
        // Predicated region
        $region53: #{tpu_custom_call.1} parent=47 // pred_check
          %p760 = pneg %p145
        $region54: #{tpu_custom_call.1} parent=47 // pred_check_branch
          %762 = sbr.rel (%p760) target = $region56
        $region55: #{tpu_custom_call.1} parent=47 // pred_region
          %s763 = sand.u32 %s26, 1
          %s764 = scalar_lea.sflag [#allocation7], %s763
          %s765 = sand.u32 %s130, 1
          %s766 = smul.addr %s765, 64
          %s767 = scalar_lea.vmem [#allocation6], %s766
          %768 = dma.done %s764, 1024
        $region56: #{tpu_custom_call.1} parent=47 // pred_fallthru
          _
        // Predicated region
        $region57: #{tpu_custom_call.1} parent=47 // pred_check
          %p769 = pneg %p173
        $region58: #{tpu_custom_call.1} parent=47 // pred_check_branch
          %771 = sbr.rel (%p769) target = $region60
        $region59: #{tpu_custom_call.1} parent=47 // pred_region
          %s772 = sand.u32 %s26, 1
          %s773 = scalar_lea.sflag [#allocation7], %s772
          %s774 = sand.u32 %s158, 1
          %s775 = smul.addr %s774, 16
          %s776 = scalar_lea.vmem [#allocation8], %s775
          %777 = dma.done %s773, 256
        $region60: #{tpu_custom_call.1} parent=47 // pred_fallthru
          _
      $region48: #{tpu_custom_call.1} parent=5 // pred_fallthru
        _
    $region6: #{tpu_custom_call.1} parent=1 // loop_footer
      %s24 = sadd.s32 1, %s20
    $region7: #{tpu_custom_call.1} parent=1 // loop_footer_branch
      %19 = sbr.rel target = $region3
    $region8: #{tpu_custom_call.1} parent=1 // loop_exit
      _
    %778 = vsyncpa [#allocation3], 1
    %s779 = scalar_lea.sflag [#allocation3], 1
    %780 = vsyncpa %s779, 1
    %781 = vsyncpa [#allocation4], 1
    %s782 = scalar_lea.sflag [#allocation4], 1
    %783 = vsyncpa %s782, 1
    %784 = vsyncpa [#allocation7], 1
    %s785 = scalar_lea.sflag [#allocation7], 1
    %786 = vsyncpa %s785, 1

</llo_original>
